<compile_context>
chip_gen: v7x
topology: tpu7x:2x2x1
jax: 0.10.0
libtpu: 0.0.40
codegen_flags: <defaults>
</compile_context>

<pallas_src>
import jax
import jax.numpy as jnp
from jax.experimental import pallas as pl
from jax.experimental.pallas import tpu as pltpu

_LANE = 128


def _round_up(x, m):
    return ((x + m - 1) // m) * m


def _conv_bn_relu_kernel(p_ref, w_ref, b_ref, o_ref):
    """out = relu(patches @ w + bias); f32 accumulate, store in o_ref dtype.

    p_ref: (tm, Kp)  im2col patches tile (bf16 by default)
    w_ref: (Kp, tn)  weights with BN scale folded in
    b_ref: (1, tn)   f32 folded BN bias
    o_ref: (tm, oc)  output tile, oc <= tn (oc < tn only when Cout < 128:
                     masked store, but Cp/Cout x fewer output HBM bytes)
    """
    acc = jnp.dot(p_ref[...], w_ref[...], preferred_element_type=jnp.float32)
    acc = jnp.maximum(acc + b_ref[...], 0.0)
    o_ref[...] = acc[:, : o_ref.shape[1]].astype(o_ref.dtype)


def _im2col_nhwc(x, kh, kw, stride, padding, dtype):
    """x: (N, C, H, W) -> patches (N*OH*OW, KH*KW*C), K ordered (kh, kw, c).

    Cast to the operand dtype *before* the im2col data movement so the
    KH*KW-inflated wrapper-side HBM traffic happens at half width (bf16).
    """
    N, C, H, W = x.shape
    xh = jnp.transpose(x, (0, 2, 3, 1)).astype(dtype)                 # NHWC
    xp = jnp.pad(xh, ((0, 0), (padding, padding), (padding, padding), (0, 0)))
    OH = (H + 2 * padding - kh) // stride + 1
    OW = (W + 2 * padding - kw) // stride + 1
    taps = []
    for i in range(kh):
        for j in range(kw):
            taps.append(
                xp[:, i:i + stride * OH:stride, j:j + stride * OW:stride, :])
    p = jnp.concatenate(taps, axis=-1)                                # (N,OH,OW,KH*KW*C)
    return p.reshape(N * OH * OW, kh * kw * C), OH, OW


def _tpu_budget():
    """Return (vmem_bytes_per_tensorcore, num_tensorcores_per_chip)."""
    kind = ""
    try:
        kind = jax.devices()[0].device_kind.lower()
    except Exception:
        pass
    is_v7 = "v7" in kind
    cap = None
    try:
        cap = int(getattr(pltpu.get_tpu_info(), "vmem_capacity_bytes", 0)) or None
    except Exception:
        cap = None
    if not cap or cap <= 0:
        cap = (64 if is_v7 else 128) * (1 << 20)
    # Clamp in case the query reports per-chip capacity on a 2-TC part.
    cap = min(cap, (64 if is_v7 else 128) * (1 << 20))
    return cap, (2 if is_v7 else 1)


def _pick_tiles(M, Kp, Cp, requested_tm, vmem_cap, num_tc, op_bytes, out_bytes):
    """Pick (tm, tn): the biggest tiles that fit the generation's VMEM budget."""
    # Leave half of VMEM as headroom for Mosaic internal scratch / semaphores:
    # ~32 MiB of tiles on v7x, ~64 MiB on v5e/v6e.
    budget = vmem_cap // 2

    # Cout tile: largest multiple-of-128 divisor of Cp whose weight slab fits
    # in half the budget even if Mosaic double-buffers the constant block.
    tn = _LANE
    for cand in range(_LANE, Cp + 1, _LANE):
        if Cp % cand == 0 and 2 * Kp * cand * op_bytes <= budget // 2:
            tn = cand

    def vmem_bytes(t):
        return (2 * t * Kp * op_bytes        # patches, double-buffered
                + 2 * Kp * tn * op_bytes     # weights (assume double-buffered)
                + 2 * tn * 4                 # f32 bias
                + 2 * t * tn * out_bytes)    # output tiles, double-buffered

    tm = min(_round_up(max(requested_tm, _LANE), _LANE), _round_up(M, _LANE))
    while tm > _LANE and vmem_bytes(tm) > budget:
        tm = max(_LANE, tm // 2)
    # Megacore balance only matters on multi-TC chips (v7x); on single-TC
    # v5e/v6e keep the biggest tile (small tiles multiply per-step overhead).
    if num_tc > 1:
        while tm > _LANE and pl.cdiv(M, tm) * (Cp // tn) < 2 * num_tc:
            tm = max(_LANE, tm // 2)
    return tm, tn, vmem_bytes(tm)


def basic_conv2d(x, conv_w, gamma, beta, running_mean, running_var,
                 *, stride, padding, eps=1e-5, tm=512,
                 operand_dtype=jnp.bfloat16, out_dtype=jnp.bfloat16,
                 out_layout="NCHW"):
    """Forward pass of BasicConv2d (eval-mode BN). x: (N, Cin, H, W) NCHW."""
    N, Cin, H, W = x.shape
    Cout, _, KH, KW = conv_w.shape
    K = Cin * KH * KW

    patches, OH, OW = _im2col_nhwc(x, KH, KW, stride, padding, operand_dtype)
    M = patches.shape[0]

    Kp = _round_up(K, _LANE)
    Cp = _round_up(Cout, _LANE)

    vmem_cap, num_tc = _tpu_budget()
    op_bytes = jnp.dtype(operand_dtype).itemsize
    out_bytes = jnp.dtype(out_dtype).itemsize
    tm, tn, vmem_est = _pick_tiles(M, Kp, Cp, tm, vmem_cap, num_tc,
                                   op_bytes, out_bytes)
    Mp = _round_up(M, tm)
    nc = Cp // tn

    # Fold eval-mode BatchNorm: scale into the weights, bias applied post-GEMM.
    scale = gamma / jnp.sqrt(running_var + eps)                       # (Cout,)
    bias = beta - running_mean * scale                                # (Cout,)

    # (Cout, Cin, KH, KW) -> (KH, KW, Cin, Cout) -> (K, Cout): matches the
    # (kh, kw, c) K ordering of the patches; BN scale folded in f32, then the
    # padded matrix is cast to the operand dtype for the MXU.
    w_col = jnp.transpose(conv_w, (2, 3, 1, 0)).reshape(K, Cout) * scale[None, :]
    w_col = jnp.pad(w_col.astype(jnp.float32),
                    ((0, Kp - K), (0, Cp - Cout))).astype(operand_dtype)
    bias2d = jnp.pad(bias.astype(jnp.float32).reshape(1, Cout),
                     ((0, 0), (0, Cp - Cout)))

    patches = jnp.pad(patches, ((0, Mp - M), (0, Kp - K)))            # stays bf16

    # For Cout < 128 store the true channel count: masked stores, but Cp/Cout x
    # fewer output HBM bytes and no follow-up channel slice. Lane-dense Cp
    # stores otherwise.
    if nc == 1 and Cout < Cp:
        out_cols, out_blk_cols = Cout, Cout
    else:
        out_cols, out_blk_cols = Cp, tn

    vmem_limit = int(min(3 * vmem_cap // 4,
                         max(32 * (1 << 20), vmem_est + 16 * (1 << 20))))

    out_flat = pl.pallas_call(
        _conv_bn_relu_kernel,
        out_shape=jax.ShapeDtypeStruct((Mp, out_cols), out_dtype),
        grid_spec=pltpu.PrefetchScalarGridSpec(
            num_scalar_prefetch=0,
            grid=(Mp // tm, nc),
            in_specs=[
                # TODO(synk): sweep pipeline_mode=pl.Buffered(3) on this stream
                # on v7x when headroom allows (hides the tm*Kp DMA).
                pl.BlockSpec((tm, Kp), lambda i, j: (i, 0)),
                pl.BlockSpec((Kp, tn), lambda i, j: (0, j)),
                pl.BlockSpec((1, tn), lambda i, j: (0, j)),
            ],
            out_specs=pl.BlockSpec((tm, out_blk_cols), lambda i, j: (i, j)),
        ),
        compiler_params=pltpu.CompilerParams(
            dimension_semantics=("parallel", "parallel"),
            vmem_limit_bytes=vmem_limit),
    )(patches, w_col, bias2d)

    out_flat = out_flat[:M, :Cout] if out_cols > Cout else out_flat[:M]
    out = out_flat.reshape(N, OH, OW, Cout)                           # NHWC
    if out_layout == "NHWC":
        return out
    return jnp.transpose(out, (0, 3, 1, 2))                           # NCHW


if __name__ == "__main__":
    # Small shapes consistent with the module: inp=4, outp=8, k=3, stride=1, pad=1
    N, Cin, H, W = 2, 4, 16, 16
    Cout, KH, KW = 8, 3, 3
    stride, padding = 1, 1

    key = jax.random.PRNGKey(0)
    kx, kw_, kg, kb, km, kv = jax.random.split(key, 6)

    x = jax.random.normal(kx, (N, Cin, H, W), dtype=jnp.float32)
    conv_w = 0.1 * jax.random.normal(kw_, (Cout, Cin, KH, KW), dtype=jnp.float32)
    gamma = 1.0 + 0.1 * jax.random.normal(kg, (Cout,), dtype=jnp.float32)
    beta = 0.1 * jax.random.normal(kb, (Cout,), dtype=jnp.float32)
    running_mean = 0.05 * jax.random.normal(km, (Cout,), dtype=jnp.float32)
    running_var = 1.0 + 0.1 * jnp.abs(jax.random.normal(kv, (Cout,), dtype=jnp.float32))

    out = basic_conv2d(x, conv_w, gamma, beta, running_mean, running_var,
                       stride=stride, padding=padding)
    out = jax.block_until_ready(out)
    assert out.shape == (N, Cout, H, W)
    assert out.dtype == jnp.bfloat16
    out_f32 = out.astype(jnp.float32)

    eps = 1e-5
    scale = gamma / jnp.sqrt(running_var + eps)
    bias = beta - running_mean * scale

    # Tight check: reference built from the same bf16-quantized operands
    # (isolates kernel/layout correctness from bf16 rounding of the inputs;
    # remaining diff = f32 accumulation order + bf16 output rounding).
    xq = x.astype(jnp.bfloat16).astype(jnp.float32)
    wq = (conv_w * scale.reshape(Cout, 1, 1, 1)).astype(jnp.bfloat16).astype(jnp.float32)
    ref_q = jax.lax.conv_general_dilated(
        xq, wq, window_strides=(stride, stride),
        padding=[(padding, padding), (padding, padding)],
        dimension_numbers=("NCHW", "OIHW", "NCHW"))
    ref_q = jnp.maximum(ref_q + bias.reshape(1, Cout, 1, 1), 0.0)
    assert jnp.allclose(out_f32, ref_q, atol=2e-2, rtol=2e-2)

    # Loose check against the full-precision f32 reference (bf16 rounding).
    ref_conv = jax.lax.conv_general_dilated(
        x, conv_w, window_strides=(stride, stride),
        padding=[(padding, padding), (padding, padding)],
        dimension_numbers=("NCHW", "OIHW", "NCHW"))
    ref = jnp.maximum(ref_conv * scale.reshape(1, Cout, 1, 1)
                      + bias.reshape(1, Cout, 1, 1), 0.0)
    assert jnp.allclose(out_f32, ref, atol=6e-2, rtol=6e-2)

    print("KERNEL_OK")
</pallas_src>

<mosaic_0001>
module attributes {stable_mosaic.version = 11 : i64} {
  func.func @_conv_bn_relu_kernel(%arg0: i32, %arg1: i32, %arg2: memref<512x128xbf16, #tpu.memory_space<vmem>>, %arg3: memref<128x128xbf16, #tpu.memory_space<vmem>>, %arg4: memref<1x128xf32, #tpu.memory_space<vmem>>, %arg5: memref<512x8xbf16, #tpu.memory_space<vmem>>) attributes {dimension_semantics = [#tpu.dimension_semantics<parallel>, #tpu.dimension_semantics<parallel>], iteration_bounds = array<i64: 1, 1>, scalar_prefetch = 0 : i64, scratch_operands = 0 : i64, tpu.core_type = #tpu.core_type<tc>, window_params = [{transform_indices = @transform_0, window_bounds = array<i64: 512, 128>}, {transform_indices = @transform_1, window_bounds = array<i64: 128, 128>}, {transform_indices = @transform_2, window_bounds = array<i64: 1, 128>}, {transform_indices = @transform_3, window_bounds = array<i64: 512, 8>}]} {
    %c0 = arith.constant 0 : index
    %c0_0 = arith.constant 0 : index
    %0 = vector.load %arg2[%c0, %c0_0] : memref<512x128xbf16, #tpu.memory_space<vmem>>, vector<512x128xbf16>
    %c0_1 = arith.constant 0 : index
    %c0_2 = arith.constant 0 : index
    %1 = vector.load %arg3[%c0_1, %c0_2] : memref<128x128xbf16, #tpu.memory_space<vmem>>, vector<128x128xbf16>
    %cst = arith.constant dense<0.000000e+00> : vector<512x128xf32>
    %2 = tpu.matmul %0, %1, %cst {dimension_numbers = #tpu.dot_dimension_numbers<[1], [0], [0], [1], [0, 0, 1, 1], [], []>} : vector<512x128xbf16>, vector<128x128xbf16>, vector<512x128xf32> -> vector<512x128xf32>
    %c0_3 = arith.constant 0 : index
    %c0_4 = arith.constant 0 : index
    %3 = vector.load %arg4[%c0_3, %c0_4] : memref<1x128xf32, #tpu.memory_space<vmem>>, vector<1x128xf32>
    %4 = vector.broadcast %3 : vector<1x128xf32> to vector<512x128xf32>
    %5 = arith.addf %2, %4 : vector<512x128xf32>
    %cst_5 = arith.constant 0.000000e+00 : f32
    %6 = vector.broadcast %cst_5 : f32 to vector<512x128xf32>
    %7 = arith.maximumf %5, %6 : vector<512x128xf32>
    %8 = vector.extract_strided_slice %7 {offsets = [0, 0], sizes = [512, 8], strides = [1, 1]} : vector<512x128xf32> to vector<512x8xf32>
    %9 = arith.truncf %8 : vector<512x8xf32> to vector<512x8xbf16>
    %c0_6 = arith.constant 0 : index
    %c0_7 = arith.constant 0 : index
    %10 = vector.load %arg5[%c0_6, %c0_7] : memref<512x8xbf16, #tpu.memory_space<vmem>>, vector<512x8xbf16>
    tpu.vector_store %arg5[%c0_6, %c0_7], %9 {strides = array<i32>} : memref<512x8xbf16, #tpu.memory_space<vmem>>, vector<512x8xbf16>,
    return
  }
  func.func @transform_0(%arg0: i32, %arg1: i32) -> (i32, i32) {
    %c0_i32 = arith.constant 0 : i32
    %c0_i32_0 = arith.constant 0 : i32
    return %arg0, %c0_i32 : i32, i32
  }
  func.func @transform_1(%arg0: i32, %arg1: i32) -> (i32, i32) {
    %c0_i32 = arith.constant 0 : i32
    %c0_i32_0 = arith.constant 0 : i32
    return %c0_i32, %arg1 : i32, i32
  }
  func.func @transform_2(%arg0: i32, %arg1: i32) -> (i32, i32) {
    %c0_i32 = arith.constant 0 : i32
    %c0_i32_0 = arith.constant 0 : i32
    return %c0_i32, %arg1 : i32, i32
  }
  func.func @transform_3(%arg0: i32, %arg1: i32) -> (i32, i32) {
    %c0_i32 = arith.constant 0 : i32
    return %arg0, %arg1 : i32, i32
  }
}

</mosaic_0001>

<llo_original>
// kernel: tpu_custom_call.1
$region0: #{tpu_custom_call.1}
  #allocation0 [shape = 'u32[]', space=smem, size = 0x4, offset = 0x4, fixed_abs, tag = 'smem constant byte address 0x4 - core index']
  #allocation1 [shape = 'u32[144,128]{1,0:T(1,128)}', space=vmem, size = 0x12000, scoped, tag = 'internal scratch']
  %s0 = inlined_call_operand.hbm [shape: bf16[512,128], index: 0, kind: input, shape index: {}]
  %s1 = inlined_call_operand.hbm [shape: bf16[128,128], index: 1, kind: input, shape index: {}]
  %s2 = inlined_call_operand.vmem [shape: f32[1,128], index: 2, kind: input, shape index: {}]
  %s3 = inlined_call_operand.vmem [shape: bf16[512,8], index: 3, kind: output, shape index: {}]
  %s4 = sld [smem:[#allocation0]]
  $region30: #{tpu_custom_call.1} parent=0
    _
  %s6 = ssub.s32 1, %s4
  %s7 = scalar_select 0, %s6, %s4
  $region1: #{tpu_custom_call.1} parent=0
    #allocation2 [shape = 'u8[131072]{0}', space=vmem, size = 0x20000, scoped, tag = 'input window, operand 0, single buffered']
    #allocation3 [shape = 's32[1]{0}', space=sflag, size = 0x4, scoped, tag = 'scoped memory for tpu_custom_call.1']
    #allocation4 [shape = 'u8[32768]{0}', space=vmem, size = 0x8000, scoped, tag = 'input window, operand 1, single buffered']
    #allocation5 [shape = 's32[1]{0}', space=sflag, size = 0x4, scoped, tag = 'scoped memory for tpu_custom_call.1']
    %8 = vsyncpa [#allocation3], 0
    %9 = vsyncpa [#allocation5], 0
    // Predicated region
    $region2: #{tpu_custom_call.1} parent=1 // pred_check
      _
    $region3: #{tpu_custom_call.1} parent=1 // pred_check_branch
      %11 = sbr.rel (0) target = $region5
    $region4: #{tpu_custom_call.1} parent=1 // pred_region
      %s13 = ssub.s32 4096, 4096
      %14 = vsyncadd [#allocation3], %s13
      %s15 = sshll.u32 [#allocation2], 4
      %s16 = int_to_ptr.vmem [resolvable:$true] %s15
      %21 = dma.hbm_to_vmem [thread:$0]  %s0, 4096, %s16, [#allocation3], 64, 64, 4
    $region5: #{tpu_custom_call.1} parent=1 // pred_fallthru
      _
    // Predicated region
    $region6: #{tpu_custom_call.1} parent=1 // pred_check
      _
    $region7: #{tpu_custom_call.1} parent=1 // pred_check_branch
      %23 = sbr.rel (0) target = $region9
    $region8: #{tpu_custom_call.1} parent=1 // pred_region
      %s25 = ssub.s32 1024, 1024
      %26 = vsyncadd [#allocation5], %s25
      %s27 = sshll.u32 [#allocation4], 4
      %s28 = int_to_ptr.vmem [resolvable:$true] %s27
      %33 = dma.hbm_to_vmem [thread:$0]  %s1, 1024, %s28, [#allocation5], 64, 64, 4
    $region9: #{tpu_custom_call.1} parent=1 // pred_fallthru
      _
    // Predicated region
    $region10: #{tpu_custom_call.1} parent=1 // pred_check
      _
    $region11: #{tpu_custom_call.1} parent=1 // pred_check_branch
      %35 = sbr.rel (0) target = $region13
    $region12: #{tpu_custom_call.1} parent=1 // pred_region
      _
    $region13: #{tpu_custom_call.1} parent=1 // pred_fallthru
      _
    // Predicated region
    $region14: #{tpu_custom_call.1} parent=1 // pred_check
      _
    $region15: #{tpu_custom_call.1} parent=1 // pred_check_branch
      %37 = sbr.rel (0) target = $region17
    $region16: #{tpu_custom_call.1} parent=1 // pred_region
      %38 = dma.done [#allocation3], 4096
    $region17: #{tpu_custom_call.1} parent=1 // pred_fallthru
      _
    // Predicated region
    $region18: #{tpu_custom_call.1} parent=1 // pred_check
      _
    $region19: #{tpu_custom_call.1} parent=1 // pred_check_branch
      %40 = sbr.rel (0) target = $region21
    $region20: #{tpu_custom_call.1} parent=1 // pred_region
      %41 = dma.done [#allocation5], 1024
    $region21: #{tpu_custom_call.1} parent=1 // pred_fallthru
      _
    %v43 = vld [vmem:[#allocation2] sm:$0xf]
    %v44 = vld [vmem:[#allocation2 + $0x4] sm:$0xf]
    %v45 = vld [vmem:[#allocation2 + $0x8] sm:$0xf]
    %v46 = vld [vmem:[#allocation2 + $0xc] sm:$0xf]
    %v47 = vld [vmem:[#allocation2 + $0x10] sm:$0xf]
    %v48 = vld [vmem:[#allocation2 + $0x14] sm:$0xf]
    %v49 = vld [vmem:[#allocation2 + $0x18] sm:$0xf]
    %v50 = vld [vmem:[#allocation2 + $0x1c] sm:$0xf]
    %v51 = vld [vmem:[#allocation2 + $0x20] sm:$0xf]
    %v52 = vld [vmem:[#allocation2 + $0x24] sm:$0xf]
    %v53 = vld [vmem:[#allocation2 + $0x28] sm:$0xf]
    %v54 = vld [vmem:[#allocation2 + $0x2c] sm:$0xf]
    %v55 = vld [vmem:[#allocation2 + $0x30] sm:$0xf]
    %v56 = vld [vmem:[#allocation2 + $0x34] sm:$0xf]
    %v57 = vld [vmem:[#allocation2 + $0x38] sm:$0xf]
    %v58 = vld [vmem:[#allocation2 + $0x3c] sm:$0xf]
    %v59 = vld [vmem:[#allocation2 + $0x40] sm:$0xf]
    %v60 = vld [vmem:[#allocation2 + $0x44] sm:$0xf]
    %v61 = vld [vmem:[#allocation2 + $0x48] sm:$0xf]
    %v62 = vld [vmem:[#allocation2 + $0x4c] sm:$0xf]
    %v63 = vld [vmem:[#allocation2 + $0x50] sm:$0xf]
    %v64 = vld [vmem:[#allocation2 + $0x54] sm:$0xf]
    %v65 = vld [vmem:[#allocation2 + $0x58] sm:$0xf]
    %v66 = vld [vmem:[#allocation2 + $0x5c] sm:$0xf]
    %v67 = vld [vmem:[#allocation2 + $0x60] sm:$0xf]
    %v68 = vld [vmem:[#allocation2 + $0x64] sm:$0xf]
    %v69 = vld [vmem:[#allocation2 + $0x68] sm:$0xf]
    %v70 = vld [vmem:[#allocation2 + $0x6c] sm:$0xf]
    %v71 = vld [vmem:[#allocation2 + $0x70] sm:$0xf]
    %v72 = vld [vmem:[#allocation2 + $0x74] sm:$0xf]
    %v73 = vld [vmem:[#allocation2 + $0x78] sm:$0xf]
    %v74 = vld [vmem:[#allocation2 + $0x7c] sm:$0xf]
    %v75 = vld [vmem:[#allocation2 + $0x80] sm:$0xf]
    %v76 = vld [vmem:[#allocation2 + $0x84] sm:$0xf]
    %v77 = vld [vmem:[#allocation2 + $0x88] sm:$0xf]
    %v78 = vld [vmem:[#allocation2 + $0x8c] sm:$0xf]
    %v79 = vld [vmem:[#allocation2 + $0x90] sm:$0xf]
    %v80 = vld [vmem:[#allocation2 + $0x94] sm:$0xf]
    %v81 = vld [vmem:[#allocation2 + $0x98] sm:$0xf]
    %v82 = vld [vmem:[#allocation2 + $0x9c] sm:$0xf]
    %v83 = vld [vmem:[#allocation2 + $0xa0] sm:$0xf]
    %v84 = vld [vmem:[#allocation2 + $0xa4] sm:$0xf]
    %v85 = vld [vmem:[#allocation2 + $0xa8] sm:$0xf]
    %v86 = vld [vmem:[#allocation2 + $0xac] sm:$0xf]
    %v87 = vld [vmem:[#allocation2 + $0xb0] sm:$0xf]
    %v88 = vld [vmem:[#allocation2 + $0xb4] sm:$0xf]
    %v89 = vld [vmem:[#allocation2 + $0xb8] sm:$0xf]
    %v90 = vld [vmem:[#allocation2 + $0xbc] sm:$0xf]
    %v91 = vld [vmem:[#allocation2 + $0xc0] sm:$0xf]
    %v92 = vld [vmem:[#allocation2 + $0xc4] sm:$0xf]
    %v93 = vld [vmem:[#allocation2 + $0xc8] sm:$0xf]
    %v94 = vld [vmem:[#allocation2 + $0xcc] sm:$0xf]
    %v95 = vld [vmem:[#allocation2 + $0xd0] sm:$0xf]
    %v96 = vld [vmem:[#allocation2 + $0xd4] sm:$0xf]
    %v97 = vld [vmem:[#allocation2 + $0xd8] sm:$0xf]
    %v98 = vld [vmem:[#allocation2 + $0xdc] sm:$0xf]
    %v99 = vld [vmem:[#allocation2 + $0xe0] sm:$0xf]
    %v100 = vld [vmem:[#allocation2 + $0xe4] sm:$0xf]
    %v101 = vld [vmem:[#allocation2 + $0xe8] sm:$0xf]
    %v102 = vld [vmem:[#allocation2 + $0xec] sm:$0xf]
    %v103 = vld [vmem:[#allocation2 + $0xf0] sm:$0xf]
    %v104 = vld [vmem:[#allocation2 + $0xf4] sm:$0xf]
    %v105 = vld [vmem:[#allocation2 + $0xf8] sm:$0xf]
    %v106 = vld [vmem:[#allocation2 + $0xfc] sm:$0xf]
    %v107 = vld [vmem:[#allocation4] sm:$0xf]
    %v108 = vld [vmem:[#allocation4 + $0x4] sm:$0xf]
    %v109 = vld [vmem:[#allocation4 + $0x8] sm:$0xf]
    %v110 = vld [vmem:[#allocation4 + $0xc] sm:$0xf]
    %v111 = vld [vmem:[#allocation4 + $0x10] sm:$0xf]
    %v112 = vld [vmem:[#allocation4 + $0x14] sm:$0xf]
    %v113 = vld [vmem:[#allocation4 + $0x18] sm:$0xf]
    %v114 = vld [vmem:[#allocation4 + $0x1c] sm:$0xf]
    %v115 = vld [vmem:[#allocation4 + $0x20] sm:$0xf]
    %v116 = vld [vmem:[#allocation4 + $0x24] sm:$0xf]
    %v117 = vld [vmem:[#allocation4 + $0x28] sm:$0xf]
    %v118 = vld [vmem:[#allocation4 + $0x2c] sm:$0xf]
    %v119 = vld [vmem:[#allocation4 + $0x30] sm:$0xf]
    %v120 = vld [vmem:[#allocation4 + $0x34] sm:$0xf]
    %v121 = vld [vmem:[#allocation4 + $0x38] sm:$0xf]
    %v122 = vld [vmem:[#allocation4 + $0x3c] sm:$0xf]
    %v123 = vld [vmem:[%s2] sm:$0x1]
    %v125 = vlaneseq
    %v126 = vshrl.u32 %v125, 7
    %v127 = vsub.s32 0, %v126
    %v128 = vrot.slane %v123, %v127
    %v194 = vunpack.c.l.b16 %v43
    %v195 = vunpack.c.l.b16 %v44
    %v196 = vunpack.c.l.b16 %v45
    %v197 = vunpack.c.l.b16 %v46
    %v198 = vunpack.c.l.b16 %v47
    %v199 = vunpack.c.l.b16 %v48
    %v200 = vunpack.c.l.b16 %v49
    %v201 = vunpack.c.l.b16 %v50
    %v202 = vunpack.c.l.b16 %v51
    %v203 = vunpack.c.l.b16 %v52
    %v204 = vunpack.c.l.b16 %v53
    %v205 = vunpack.c.l.b16 %v54
    %v206 = vunpack.c.l.b16 %v55
    %v207 = vunpack.c.l.b16 %v56
    %v208 = vunpack.c.l.b16 %v57
    %v209 = vunpack.c.l.b16 %v58
    %v210 = vunpack.c.l.b16 %v59
    %v211 = vunpack.c.l.b16 %v60
    %v212 = vunpack.c.l.b16 %v61
    %v213 = vunpack.c.l.b16 %v62
    %v214 = vunpack.c.l.b16 %v63
    %v215 = vunpack.c.l.b16 %v64
    %v216 = vunpack.c.l.b16 %v65
    %v217 = vunpack.c.l.b16 %v66
    %v218 = vunpack.c.l.b16 %v67
    %v219 = vunpack.c.l.b16 %v68
    %v220 = vunpack.c.l.b16 %v69
    %v221 = vunpack.c.l.b16 %v70
    %v222 = vunpack.c.l.b16 %v71
    %v223 = vunpack.c.l.b16 %v72
    %v224 = vunpack.c.l.b16 %v73
    %v225 = vunpack.c.l.b16 %v74
    %v226 = vunpack.c.l.b16 %v75
    %v227 = vunpack.c.l.b16 %v76
    %v228 = vunpack.c.l.b16 %v77
    %v229 = vunpack.c.l.b16 %v78
    %v230 = vunpack.c.l.b16 %v79
    %v231 = vunpack.c.l.b16 %v80
    %v232 = vunpack.c.l.b16 %v81
    %v233 = vunpack.c.l.b16 %v82
    %v234 = vunpack.c.l.b16 %v83
    %v235 = vunpack.c.l.b16 %v84
    %v236 = vunpack.c.l.b16 %v85
    %v237 = vunpack.c.l.b16 %v86
    %v238 = vunpack.c.l.b16 %v87
    %v239 = vunpack.c.l.b16 %v88
    %v240 = vunpack.c.l.b16 %v89
    %v241 = vunpack.c.l.b16 %v90
    %v242 = vunpack.c.l.b16 %v91
    %v243 = vunpack.c.l.b16 %v92
    %v244 = vunpack.c.l.b16 %v93
    %v245 = vunpack.c.l.b16 %v94
    %v246 = vunpack.c.l.b16 %v95
    %v247 = vunpack.c.l.b16 %v96
    %v248 = vunpack.c.l.b16 %v97
    %v249 = vunpack.c.l.b16 %v98
    %v250 = vunpack.c.l.b16 %v99
    %v251 = vunpack.c.l.b16 %v100
    %v252 = vunpack.c.l.b16 %v101
    %v253 = vunpack.c.l.b16 %v102
    %v254 = vunpack.c.l.b16 %v103
    %v255 = vunpack.c.l.b16 %v104
    %v256 = vunpack.c.l.b16 %v105
    %v257 = vunpack.c.l.b16 %v106
    %v258 = vpack.c.b16 %v195, %v194
    %v259 = vpack.c.b16 %v197, %v196
    %v260 = vpack.c.b16 %v199, %v198
    %v261 = vpack.c.b16 %v201, %v200
    %v262 = vpack.c.b16 %v203, %v202
    %v263 = vpack.c.b16 %v205, %v204
    %v264 = vpack.c.b16 %v207, %v206
    %v265 = vpack.c.b16 %v209, %v208
    %v266 = vpack.c.b16 %v211, %v210
    %v267 = vpack.c.b16 %v213, %v212
    %v268 = vpack.c.b16 %v215, %v214
    %v269 = vpack.c.b16 %v217, %v216
    %v270 = vpack.c.b16 %v219, %v218
    %v271 = vpack.c.b16 %v221, %v220
    %v272 = vpack.c.b16 %v223, %v222
    %v273 = vpack.c.b16 %v225, %v224
    %v274 = vpack.c.b16 %v227, %v226
    %v275 = vpack.c.b16 %v229, %v228
    %v276 = vpack.c.b16 %v231, %v230
    %v277 = vpack.c.b16 %v233, %v232
    %v278 = vpack.c.b16 %v235, %v234
    %v279 = vpack.c.b16 %v237, %v236
    %v280 = vpack.c.b16 %v239, %v238
    %v281 = vpack.c.b16 %v241, %v240
    %v282 = vpack.c.b16 %v243, %v242
    %v283 = vpack.c.b16 %v245, %v244
    %v284 = vpack.c.b16 %v247, %v246
    %v285 = vpack.c.b16 %v249, %v248
    %v286 = vpack.c.b16 %v251, %v250
    %v287 = vpack.c.b16 %v253, %v252
    %v288 = vpack.c.b16 %v255, %v254
    %v289 = vpack.c.b16 %v257, %v256
    %v338 = vunpack.c.l.b16 %v107
    %v339 = vunpack.c.l.b16 %v108
    %v340 = vunpack.c.l.b16 %v109
    %v341 = vunpack.c.l.b16 %v110
    %v342 = vunpack.c.l.b16 %v111
    %v343 = vunpack.c.l.b16 %v112
    %v344 = vunpack.c.l.b16 %v113
    %v345 = vunpack.c.l.b16 %v114
    %v346 = vunpack.c.l.b16 %v115
    %v347 = vunpack.c.l.b16 %v116
    %v348 = vunpack.c.l.b16 %v117
    %v349 = vunpack.c.l.b16 %v118
    %v350 = vunpack.c.l.b16 %v119
    %v351 = vunpack.c.l.b16 %v120
    %v352 = vunpack.c.l.b16 %v121
    %v353 = vunpack.c.l.b16 %v122
    %v354 = vpack.c.b16 %v339, %v338
    %v355 = vpack.c.b16 %v341, %v340
    %v356 = vpack.c.b16 %v343, %v342
    %v357 = vpack.c.b16 %v345, %v344
    %v358 = vpack.c.b16 %v347, %v346
    %v359 = vpack.c.b16 %v349, %v348
    %v360 = vpack.c.b16 %v351, %v350
    %v361 = vpack.c.b16 %v353, %v352
    %370 = vmatprep.subr.bf16.mxu0 0
    %371 = vmatpush1.bf16.msra.mxu0 %v354
    %372 = vmatprep.subr.bf16.mxu0 0
    %373 = vmatpush1.bf16.msra.mxu0 %v355
    %374 = vmatprep.subr.bf16.mxu0 0
    %375 = vmatpush1.bf16.msra.mxu0 %v356
    %376 = vmatprep.subr.bf16.mxu0 0
    %377 = vmatpush1.bf16.msra.mxu0 %v357
    %378 = vmatprep.subr.bf16.mxu0 0
    %379 = vmatpush1.bf16.msra.mxu0 %v358
    %380 = vmatprep.subr.bf16.mxu0 0
    %381 = vmatpush1.bf16.msra.mxu0 %v359
    %382 = vmatprep.subr.bf16.mxu0 0
    %383 = vmatpush1.bf16.msra.mxu0 %v360
    %384 = vmatprep.subr.bf16.mxu0 0
    %385 = vmatpush1.bf16.msra.mxu0 %v361
    %386 = vmatprep.subr.bf16.mxu0 0
    %387 = vmatpush1.bf16.msra.mxu0 0
    %388 = vmatprep.subr.bf16.mxu0 0
    %389 = vmatpush1.bf16.msra.mxu0 0
    %390 = vmatprep.subr.bf16.mxu0 0
    %391 = vmatpush1.bf16.msra.mxu0 0
    %392 = vmatprep.subr.bf16.mxu0 0
    %393 = vmatpush1.bf16.msra.mxu0 0
    %394 = vmatprep.subr.bf16.mxu0 0
    %395 = vmatpush1.bf16.msra.mxu0 0
    %396 = vmatprep.subr.bf16.mxu0 0
    %397 = vmatpush1.bf16.msra.mxu0 0
    %398 = vmatprep.subr.bf16.mxu0 0
    %399 = vmatpush1.bf16.msra.mxu0 0
    %400 = vmatprep.subr.bf16.mxu0 0
    %401 = vmatpush1.bf16.msra.mxu0 0
    %402 = vmatprep.mubr.bf16.mxu0 0
    %403 = vmatmul.mubr.bf16.gmra.mrb[0].mxu0 %v258
    %v404 = vpop.f32.mrb[0].mxu0
    %v405 = vadd.f32 %v128, %v404
    %v406 = vpop.f32.mrb[0].mxu0
    %v407 = vpop.f32.mrb[0].mxu0
    %v408 = vadd.f32 %v128, %v407
    %v409 = vpop.f32.mrb[0].mxu0
    %410 = vmatprep.mubr.bf16.mxu0 0
    %411 = vmatmul.mubr.bf16.gmra.mrb[0].mxu0 %v259
    %v412 = vpop.f32.mrb[0].mxu0
    %v413 = vadd.f32 %v128, %v412
    %v414 = vpop.f32.mrb[0].mxu0
    %v415 = vpop.f32.mrb[0].mxu0
    %v416 = vadd.f32 %v128, %v415
    %v417 = vpop.f32.mrb[0].mxu0
    %418 = vmatprep.mubr.bf16.mxu0 0
    %419 = vmatmul.mubr.bf16.gmra.mrb[0].mxu0 %v260
    %v420 = vpop.f32.mrb[0].mxu0
    %v421 = vadd.f32 %v128, %v420
    %v422 = vpop.f32.mrb[0].mxu0
    %v423 = vpop.f32.mrb[0].mxu0
    %v424 = vadd.f32 %v128, %v423
    %v425 = vpop.f32.mrb[0].mxu0
    %426 = vmatprep.mubr.bf16.mxu0 0
    %427 = vmatmul.mubr.bf16.gmra.mrb[0].mxu0 %v261
    %v428 = vpop.f32.mrb[0].mxu0
    %v429 = vadd.f32 %v128, %v428
    %v430 = vpop.f32.mrb[0].mxu0
    %v431 = vpop.f32.mrb[0].mxu0
    %v432 = vadd.f32 %v128, %v431
    %v433 = vpop.f32.mrb[0].mxu0
    %434 = vmatprep.mubr.bf16.mxu0 0
    %435 = vmatmul.mubr.bf16.gmra.mrb[0].mxu0 %v262
    %v436 = vpop.f32.mrb[0].mxu0
    %v437 = vadd.f32 %v128, %v436
    %v438 = vpop.f32.mrb[0].mxu0
    %v439 = vpop.f32.mrb[0].mxu0
    %v440 = vadd.f32 %v128, %v439
    %v441 = vpop.f32.mrb[0].mxu0
    %442 = vmatprep.mubr.bf16.mxu0 0
    %443 = vmatmul.mubr.bf16.gmra.mrb[0].mxu0 %v263
    %v444 = vpop.f32.mrb[0].mxu0
    %v445 = vadd.f32 %v128, %v444
    %v446 = vpop.f32.mrb[0].mxu0
    %v447 = vpop.f32.mrb[0].mxu0
    %v448 = vadd.f32 %v128, %v447
    %v449 = vpop.f32.mrb[0].mxu0
    %450 = vmatprep.mubr.bf16.mxu0 0
    %451 = vmatmul.mubr.bf16.gmra.mrb[0].mxu0 %v264
    %v452 = vpop.f32.mrb[0].mxu0
    %v453 = vadd.f32 %v128, %v452
    %v454 = vpop.f32.mrb[0].mxu0
    %v455 = vpop.f32.mrb[0].mxu0
    %v456 = vadd.f32 %v128, %v455
    %v457 = vpop.f32.mrb[0].mxu0
    %458 = vmatprep.mubr.bf16.mxu0 0
    %459 = vmatmul.mubr.bf16.gmra.mrb[0].mxu0 %v265
    %v460 = vpop.f32.mrb[0].mxu0
    %v461 = vadd.f32 %v128, %v460
    %v462 = vpop.f32.mrb[0].mxu0
    %v463 = vpop.f32.mrb[0].mxu0
    %v464 = vadd.f32 %v128, %v463
    %v465 = vpop.f32.mrb[0].mxu0
    %466 = vmatprep.mubr.bf16.mxu0 0
    %467 = vmatmul.mubr.bf16.gmra.mrb[0].mxu0 %v266
    %v468 = vpop.f32.mrb[0].mxu0
    %v469 = vadd.f32 %v128, %v468
    %v470 = vpop.f32.mrb[0].mxu0
    %v471 = vpop.f32.mrb[0].mxu0
    %v472 = vadd.f32 %v128, %v471
    %v473 = vpop.f32.mrb[0].mxu0
    %474 = vmatprep.mubr.bf16.mxu0 0
    %475 = vmatmul.mubr.bf16.gmra.mrb[0].mxu0 %v267
    %v476 = vpop.f32.mrb[0].mxu0
    %v477 = vadd.f32 %v128, %v476
    %v478 = vpop.f32.mrb[0].mxu0
    %v479 = vpop.f32.mrb[0].mxu0
    %v480 = vadd.f32 %v128, %v479
    %v481 = vpop.f32.mrb[0].mxu0
    %482 = vmatprep.mubr.bf16.mxu0 0
    %483 = vmatmul.mubr.bf16.gmra.mrb[0].mxu0 %v268
    %v484 = vpop.f32.mrb[0].mxu0
    %v485 = vadd.f32 %v128, %v484
    %v486 = vpop.f32.mrb[0].mxu0
    %v487 = vpop.f32.mrb[0].mxu0
    %v488 = vadd.f32 %v128, %v487
    %v489 = vpop.f32.mrb[0].mxu0
    %490 = vmatprep.mubr.bf16.mxu0 0
    %491 = vmatmul.mubr.bf16.gmra.mrb[0].mxu0 %v269
    %v492 = vpop.f32.mrb[0].mxu0
    %v493 = vadd.f32 %v128, %v492
    %v494 = vpop.f32.mrb[0].mxu0
    %v495 = vpop.f32.mrb[0].mxu0
    %v496 = vadd.f32 %v128, %v495
    %v497 = vpop.f32.mrb[0].mxu0
    %498 = vmatprep.mubr.bf16.mxu0 0
    %499 = vmatmul.mubr.bf16.gmra.mrb[0].mxu0 %v270
    %v500 = vpop.f32.mrb[0].mxu0
    %v501 = vadd.f32 %v128, %v500
    %v502 = vpop.f32.mrb[0].mxu0
    %v503 = vpop.f32.mrb[0].mxu0
    %v504 = vadd.f32 %v128, %v503
    %v505 = vpop.f32.mrb[0].mxu0
    %506 = vmatprep.mubr.bf16.mxu0 0
    %507 = vmatmul.mubr.bf16.gmra.mrb[0].mxu0 %v271
    %v508 = vpop.f32.mrb[0].mxu0
    %v509 = vadd.f32 %v128, %v508
    %v510 = vpop.f32.mrb[0].mxu0
    %v511 = vpop.f32.mrb[0].mxu0
    %v512 = vadd.f32 %v128, %v511
    %v513 = vpop.f32.mrb[0].mxu0
    %514 = vmatprep.mubr.bf16.mxu0 0
    %515 = vmatmul.mubr.bf16.gmra.mrb[0].mxu0 %v272
    %v516 = vpop.f32.mrb[0].mxu0
    %v517 = vadd.f32 %v128, %v516
    %v518 = vpop.f32.mrb[0].mxu0
    %v519 = vpop.f32.mrb[0].mxu0
    %v520 = vadd.f32 %v128, %v519
    %v521 = vpop.f32.mrb[0].mxu0
    %522 = vmatprep.mubr.bf16.mxu0 0
    %523 = vmatmul.mubr.bf16.gmra.mrb[0].mxu0 %v273
    %v524 = vpop.f32.mrb[0].mxu0
    %v525 = vadd.f32 %v128, %v524
    %v526 = vpop.f32.mrb[0].mxu0
    %v527 = vpop.f32.mrb[0].mxu0
    %v528 = vadd.f32 %v128, %v527
    %v529 = vpop.f32.mrb[0].mxu0
    %530 = vmatprep.mubr.bf16.mxu0 0
    %531 = vmatmul.mubr.bf16.gmra.mrb[0].mxu0 %v274
    %v532 = vpop.f32.mrb[0].mxu0
    %v533 = vadd.f32 %v128, %v532
    %v534 = vpop.f32.mrb[0].mxu0
    %v535 = vpop.f32.mrb[0].mxu0
    %v536 = vadd.f32 %v128, %v535
    %v537 = vpop.f32.mrb[0].mxu0
    %538 = vmatprep.mubr.bf16.mxu0 0
    %539 = vmatmul.mubr.bf16.gmra.mrb[0].mxu0 %v275
    %v540 = vpop.f32.mrb[0].mxu0
    %v541 = vadd.f32 %v128, %v540
    %v542 = vpop.f32.mrb[0].mxu0
    %v543 = vpop.f32.mrb[0].mxu0
    %v544 = vadd.f32 %v128, %v543
    %v545 = vpop.f32.mrb[0].mxu0
    %546 = vmatprep.mubr.bf16.mxu0 0
    %547 = vmatmul.mubr.bf16.gmra.mrb[0].mxu0 %v276
    %v548 = vpop.f32.mrb[0].mxu0
    %v549 = vadd.f32 %v128, %v548
    %v550 = vpop.f32.mrb[0].mxu0
    %v551 = vpop.f32.mrb[0].mxu0
    %v552 = vadd.f32 %v128, %v551
    %v553 = vpop.f32.mrb[0].mxu0
    %554 = vmatprep.mubr.bf16.mxu0 0
    %555 = vmatmul.mubr.bf16.gmra.mrb[0].mxu0 %v277
    %v556 = vpop.f32.mrb[0].mxu0
    %v557 = vadd.f32 %v128, %v556
    %v558 = vpop.f32.mrb[0].mxu0
    %v559 = vpop.f32.mrb[0].mxu0
    %v560 = vadd.f32 %v128, %v559
    %v561 = vpop.f32.mrb[0].mxu0
    %562 = vmatprep.mubr.bf16.mxu0 0
    %563 = vmatmul.mubr.bf16.gmra.mrb[0].mxu0 %v278
    %v564 = vpop.f32.mrb[0].mxu0
    %v565 = vadd.f32 %v128, %v564
    %v566 = vpop.f32.mrb[0].mxu0
    %v567 = vpop.f32.mrb[0].mxu0
    %v568 = vadd.f32 %v128, %v567
    %v569 = vpop.f32.mrb[0].mxu0
    %570 = vmatprep.mubr.bf16.mxu0 0
    %571 = vmatmul.mubr.bf16.gmra.mrb[0].mxu0 %v279
    %v572 = vpop.f32.mrb[0].mxu0
    %v573 = vadd.f32 %v128, %v572
    %v574 = vpop.f32.mrb[0].mxu0
    %v575 = vpop.f32.mrb[0].mxu0
    %v576 = vadd.f32 %v128, %v575
    %v577 = vpop.f32.mrb[0].mxu0
    %578 = vmatprep.mubr.bf16.mxu0 0
    %579 = vmatmul.mubr.bf16.gmra.mrb[0].mxu0 %v280
    %v580 = vpop.f32.mrb[0].mxu0
    %v581 = vadd.f32 %v128, %v580
    %v582 = vpop.f32.mrb[0].mxu0
    %v583 = vpop.f32.mrb[0].mxu0
    %v584 = vadd.f32 %v128, %v583
    %v585 = vpop.f32.mrb[0].mxu0
    %586 = vmatprep.mubr.bf16.mxu0 0
    %587 = vmatmul.mubr.bf16.gmra.mrb[0].mxu0 %v281
    %v588 = vpop.f32.mrb[0].mxu0
    %v589 = vadd.f32 %v128, %v588
    %v590 = vpop.f32.mrb[0].mxu0
    %v591 = vpop.f32.mrb[0].mxu0
    %v592 = vadd.f32 %v128, %v591
    %v593 = vpop.f32.mrb[0].mxu0
    %594 = vmatprep.mubr.bf16.mxu0 0
    %595 = vmatmul.mubr.bf16.gmra.mrb[0].mxu0 %v282
    %v596 = vpop.f32.mrb[0].mxu0
    %v597 = vadd.f32 %v128, %v596
    %v598 = vpop.f32.mrb[0].mxu0
    %v599 = vpop.f32.mrb[0].mxu0
    %v600 = vadd.f32 %v128, %v599
    %v601 = vpop.f32.mrb[0].mxu0
    %602 = vmatprep.mubr.bf16.mxu0 0
    %603 = vmatmul.mubr.bf16.gmra.mrb[0].mxu0 %v283
    %v604 = vpop.f32.mrb[0].mxu0
    %v605 = vadd.f32 %v128, %v604
    %v606 = vpop.f32.mrb[0].mxu0
    %v607 = vpop.f32.mrb[0].mxu0
    %v608 = vadd.f32 %v128, %v607
    %v609 = vpop.f32.mrb[0].mxu0
    %610 = vmatprep.mubr.bf16.mxu0 0
    %611 = vmatmul.mubr.bf16.gmra.mrb[0].mxu0 %v284
    %v612 = vpop.f32.mrb[0].mxu0
    %v613 = vadd.f32 %v128, %v612
    %v614 = vpop.f32.mrb[0].mxu0
    %v615 = vpop.f32.mrb[0].mxu0
    %v616 = vadd.f32 %v128, %v615
    %v617 = vpop.f32.mrb[0].mxu0
    %618 = vmatprep.mubr.bf16.mxu0 0
    %619 = vmatmul.mubr.bf16.gmra.mrb[0].mxu0 %v285
    %v620 = vpop.f32.mrb[0].mxu0
    %v621 = vadd.f32 %v128, %v620
    %v622 = vpop.f32.mrb[0].mxu0
    %v623 = vpop.f32.mrb[0].mxu0
    %v624 = vadd.f32 %v128, %v623
    %v625 = vpop.f32.mrb[0].mxu0
    %626 = vmatprep.mubr.bf16.mxu0 0
    %627 = vmatmul.mubr.bf16.gmra.mrb[0].mxu0 %v286
    %v628 = vpop.f32.mrb[0].mxu0
    %v629 = vadd.f32 %v128, %v628
    %v630 = vpop.f32.mrb[0].mxu0
    %v631 = vpop.f32.mrb[0].mxu0
    %v632 = vadd.f32 %v128, %v631
    %v633 = vpop.f32.mrb[0].mxu0
    %634 = vmatprep.mubr.bf16.mxu0 0
    %635 = vmatmul.mubr.bf16.gmra.mrb[0].mxu0 %v287
    %v636 = vpop.f32.mrb[0].mxu0
    %v637 = vadd.f32 %v128, %v636
    %v638 = vpop.f32.mrb[0].mxu0
    %v639 = vpop.f32.mrb[0].mxu0
    %v640 = vadd.f32 %v128, %v639
    %v641 = vpop.f32.mrb[0].mxu0
    %642 = vmatprep.mubr.bf16.mxu0 0
    %643 = vmatmul.mubr.bf16.gmra.mrb[0].mxu0 %v288
    %v644 = vpop.f32.mrb[0].mxu0
    %v645 = vadd.f32 %v128, %v644
    %v646 = vpop.f32.mrb[0].mxu0
    %v647 = vpop.f32.mrb[0].mxu0
    %v648 = vadd.f32 %v128, %v647
    %v649 = vpop.f32.mrb[0].mxu0
    %650 = vmatprep.mubr.bf16.mxu0 0
    %651 = vmatmul.mubr.bf16.gmra.mrb[0].mxu0 %v289
    %v652 = vpop.f32.mrb[0].mxu0
    %v653 = vadd.f32 %v128, %v652
    %v654 = vpop.f32.mrb[0].mxu0
    %v655 = vpop.f32.mrb[0].mxu0
    %v656 = vadd.f32 %v128, %v655
    %v657 = vpop.f32.mrb[0].mxu0
    %658 = vdwg.mxu0
    %v659 = vmax.f32 %v405, 0.0
    %v660 = vmax.f32 %v408, 0.0
    %v661 = vmax.f32 %v413, 0.0
    %v662 = vmax.f32 %v416, 0.0
    %v663 = vmax.f32 %v421, 0.0
    %v664 = vmax.f32 %v424, 0.0
    %v665 = vmax.f32 %v429, 0.0
    %v666 = vmax.f32 %v432, 0.0
    %v667 = vmax.f32 %v437, 0.0
    %v668 = vmax.f32 %v440, 0.0
    %v669 = vmax.f32 %v445, 0.0
    %v670 = vmax.f32 %v448, 0.0
    %v671 = vmax.f32 %v453, 0.0
    %v672 = vmax.f32 %v456, 0.0
    %v673 = vmax.f32 %v461, 0.0
    %v674 = vmax.f32 %v464, 0.0
    %v675 = vmax.f32 %v469, 0.0
    %v676 = vmax.f32 %v472, 0.0
    %v677 = vmax.f32 %v477, 0.0
    %v678 = vmax.f32 %v480, 0.0
    %v679 = vmax.f32 %v485, 0.0
    %v680 = vmax.f32 %v488, 0.0
    %v681 = vmax.f32 %v493, 0.0
    %v682 = vmax.f32 %v496, 0.0
    %v683 = vmax.f32 %v501, 0.0
    %v684 = vmax.f32 %v504, 0.0
    %v685 = vmax.f32 %v509, 0.0
    %v686 = vmax.f32 %v512, 0.0
    %v687 = vmax.f32 %v517, 0.0
    %v688 = vmax.f32 %v520, 0.0
    %v689 = vmax.f32 %v525, 0.0
    %v690 = vmax.f32 %v528, 0.0
    %v691 = vmax.f32 %v533, 0.0
    %v692 = vmax.f32 %v536, 0.0
    %v693 = vmax.f32 %v541, 0.0
    %v694 = vmax.f32 %v544, 0.0
    %v695 = vmax.f32 %v549, 0.0
    %v696 = vmax.f32 %v552, 0.0
    %v697 = vmax.f32 %v557, 0.0
    %v698 = vmax.f32 %v560, 0.0
    %v699 = vmax.f32 %v565, 0.0
    %v700 = vmax.f32 %v568, 0.0
    %v701 = vmax.f32 %v573, 0.0
    %v702 = vmax.f32 %v576, 0.0
    %v703 = vmax.f32 %v581, 0.0
    %v704 = vmax.f32 %v584, 0.0
    %v705 = vmax.f32 %v589, 0.0
    %v706 = vmax.f32 %v592, 0.0
    %v707 = vmax.f32 %v597, 0.0
    %v708 = vmax.f32 %v600, 0.0
    %v709 = vmax.f32 %v605, 0.0
    %v710 = vmax.f32 %v608, 0.0
    %v711 = vmax.f32 %v613, 0.0
    %v712 = vmax.f32 %v616, 0.0
    %v713 = vmax.f32 %v621, 0.0
    %v714 = vmax.f32 %v624, 0.0
    %v715 = vmax.f32 %v629, 0.0
    %v716 = vmax.f32 %v632, 0.0
    %v717 = vmax.f32 %v637, 0.0
    %v718 = vmax.f32 %v640, 0.0
    %v719 = vmax.f32 %v645, 0.0
    %v720 = vmax.f32 %v648, 0.0
    %v721 = vmax.f32 %v653, 0.0
    %v722 = vmax.f32 %v656, 0.0
    %v723 = vpack.c.bf16 %v660, %v659
    %v724 = vpack.c.bf16 %v662, %v661
    %v725 = vpack.c.bf16 %v664, %v663
    %v726 = vpack.c.bf16 %v666, %v665
    %v727 = vpack.c.bf16 %v668, %v667
    %v728 = vpack.c.bf16 %v670, %v669
    %v729 = vpack.c.bf16 %v672, %v671
    %v730 = vpack.c.bf16 %v674, %v673
    %v731 = vpack.c.bf16 %v676, %v675
    %v732 = vpack.c.bf16 %v678, %v677
    %v733 = vpack.c.bf16 %v680, %v679
    %v734 = vpack.c.bf16 %v682, %v681
    %v735 = vpack.c.bf16 %v684, %v683
    %v736 = vpack.c.bf16 %v686, %v685
    %v737 = vpack.c.bf16 %v688, %v687
    %v738 = vpack.c.bf16 %v690, %v689
    %v739 = vpack.c.bf16 %v692, %v691
    %v740 = vpack.c.bf16 %v694, %v693
    %v741 = vpack.c.bf16 %v696, %v695
    %v742 = vpack.c.bf16 %v698, %v697
    %v743 = vpack.c.bf16 %v700, %v699
    %v744 = vpack.c.bf16 %v702, %v701
    %v745 = vpack.c.bf16 %v704, %v703
    %v746 = vpack.c.bf16 %v706, %v705
    %v747 = vpack.c.bf16 %v708, %v707
    %v748 = vpack.c.bf16 %v710, %v709
    %v749 = vpack.c.bf16 %v712, %v711
    %v750 = vpack.c.bf16 %v714, %v713
    %v751 = vpack.c.bf16 %v716, %v715
    %v752 = vpack.c.bf16 %v718, %v717
    %v753 = vpack.c.bf16 %v720, %v719
    %v754 = vpack.c.bf16 %v722, %v721
    %v787 = vunpack.c.l.b16 %v723
    %v788 = vunpack.c.h.b16 %v723
    %v789 = vunpack.c.l.b16 %v724
    %v790 = vunpack.c.h.b16 %v724
    %v791 = vunpack.c.l.b16 %v725
    %v792 = vunpack.c.h.b16 %v725
    %v793 = vunpack.c.l.b16 %v726
    %v794 = vunpack.c.h.b16 %v726
    %v795 = vunpack.c.l.b16 %v727
    %v796 = vunpack.c.h.b16 %v727
    %v797 = vunpack.c.l.b16 %v728
    %v798 = vunpack.c.h.b16 %v728
    %v799 = vunpack.c.l.b16 %v729
    %v800 = vunpack.c.h.b16 %v729
    %v801 = vunpack.c.l.b16 %v730
    %v802 = vunpack.c.h.b16 %v730
    %v803 = vunpack.c.l.b16 %v731
    %v804 = vunpack.c.h.b16 %v731
    %v805 = vunpack.c.l.b16 %v732
    %v806 = vunpack.c.h.b16 %v732
    %v807 = vunpack.c.l.b16 %v733
    %v808 = vunpack.c.h.b16 %v733
    %v809 = vunpack.c.l.b16 %v734
    %v810 = vunpack.c.h.b16 %v734
    %v811 = vunpack.c.l.b16 %v735
    %v812 = vunpack.c.h.b16 %v735
    %v813 = vunpack.c.l.b16 %v736
    %v814 = vunpack.c.h.b16 %v736
    %v815 = vunpack.c.l.b16 %v737
    %v816 = vunpack.c.h.b16 %v737
    %v817 = vunpack.c.l.b16 %v738
    %v818 = vunpack.c.h.b16 %v738
    %v819 = vunpack.c.l.b16 %v739
    %v820 = vunpack.c.h.b16 %v739
    %v821 = vunpack.c.l.b16 %v740
    %v822 = vunpack.c.h.b16 %v740
    %v823 = vunpack.c.l.b16 %v741
    %v824 = vunpack.c.h.b16 %v741
    %v825 = vunpack.c.l.b16 %v742
    %v826 = vunpack.c.h.b16 %v742
    %v827 = vunpack.c.l.b16 %v743
    %v828 = vunpack.c.h.b16 %v743
    %v829 = vunpack.c.l.b16 %v744
    %v830 = vunpack.c.h.b16 %v744
    %v831 = vunpack.c.l.b16 %v745
    %v832 = vunpack.c.h.b16 %v745
    %v833 = vunpack.c.l.b16 %v746
    %v834 = vunpack.c.h.b16 %v746
    %v835 = vunpack.c.l.b16 %v747
    %v836 = vunpack.c.h.b16 %v747
    %v837 = vunpack.c.l.b16 %v748
    %v838 = vunpack.c.h.b16 %v748
    %v839 = vunpack.c.l.b16 %v749
    %v840 = vunpack.c.h.b16 %v749
    %v841 = vunpack.c.l.b16 %v750
    %v842 = vunpack.c.h.b16 %v750
    %v843 = vunpack.c.l.b16 %v751
    %v844 = vunpack.c.h.b16 %v751
    %v845 = vunpack.c.l.b16 %v752
    %v846 = vunpack.c.h.b16 %v752
    %v847 = vunpack.c.l.b16 %v753
    %v848 = vunpack.c.h.b16 %v753
    %v849 = vunpack.c.l.b16 %v754
    %v850 = vunpack.c.h.b16 %v754
    %v851 = vpack.c.b16 %v787, %v787
    %v852 = vpack.c.b16 %v788, %v788
    %v853 = vpack.c.b16 %v789, %v789
    %v854 = vpack.c.b16 %v790, %v790
    %v855 = vpack.c.b16 %v791, %v791
    %v856 = vpack.c.b16 %v792, %v792
    %v857 = vpack.c.b16 %v793, %v793
    %v858 = vpack.c.b16 %v794, %v794
    %v859 = vpack.c.b16 %v795, %v795
    %v860 = vpack.c.b16 %v796, %v796
    %v861 = vpack.c.b16 %v797, %v797
    %v862 = vpack.c.b16 %v798, %v798
    %v863 = vpack.c.b16 %v799, %v799
    %v864 = vpack.c.b16 %v800, %v800
    %v865 = vpack.c.b16 %v801, %v801
    %v866 = vpack.c.b16 %v802, %v802
    %v867 = vpack.c.b16 %v803, %v803
    %v868 = vpack.c.b16 %v804, %v804
    %v869 = vpack.c.b16 %v805, %v805
    %v870 = vpack.c.b16 %v806, %v806
    %v871 = vpack.c.b16 %v807, %v807
    %v872 = vpack.c.b16 %v808, %v808
    %v873 = vpack.c.b16 %v809, %v809
    %v874 = vpack.c.b16 %v810, %v810
    %v875 = vpack.c.b16 %v811, %v811
    %v876 = vpack.c.b16 %v812, %v812
    %v877 = vpack.c.b16 %v813, %v813
    %v878 = vpack.c.b16 %v814, %v814
    %v879 = vpack.c.b16 %v815, %v815
    %v880 = vpack.c.b16 %v816, %v816
    %v881 = vpack.c.b16 %v817, %v817
    %v882 = vpack.c.b16 %v818, %v818
    %v883 = vpack.c.b16 %v819, %v819
    %v884 = vpack.c.b16 %v820, %v820
    %v885 = vpack.c.b16 %v821, %v821
    %v886 = vpack.c.b16 %v822, %v822
    %v887 = vpack.c.b16 %v823, %v823
    %v888 = vpack.c.b16 %v824, %v824
    %v889 = vpack.c.b16 %v825, %v825
    %v890 = vpack.c.b16 %v826, %v826
    %v891 = vpack.c.b16 %v827, %v827
    %v892 = vpack.c.b16 %v828, %v828
    %v893 = vpack.c.b16 %v829, %v829
    %v894 = vpack.c.b16 %v830, %v830
    %v895 = vpack.c.b16 %v831, %v831
    %v896 = vpack.c.b16 %v832, %v832
    %v897 = vpack.c.b16 %v833, %v833
    %v898 = vpack.c.b16 %v834, %v834
    %v899 = vpack.c.b16 %v835, %v835
    %v900 = vpack.c.b16 %v836, %v836
    %v901 = vpack.c.b16 %v837, %v837
    %v902 = vpack.c.b16 %v838, %v838
    %v903 = vpack.c.b16 %v839, %v839
    %v904 = vpack.c.b16 %v840, %v840
    %v905 = vpack.c.b16 %v841, %v841
    %v906 = vpack.c.b16 %v842, %v842
    %v907 = vpack.c.b16 %v843, %v843
    %v908 = vpack.c.b16 %v844, %v844
    %v909 = vpack.c.b16 %v845, %v845
    %v910 = vpack.c.b16 %v846, %v846
    %v911 = vpack.c.b16 %v847, %v847
    %v912 = vpack.c.b16 %v848, %v848
    %v913 = vpack.c.b16 %v849, %v849
    %v914 = vpack.c.b16 %v850, %v850
    %vm979 = vcmask 60416
    %980 = vst.msk [vmem:[%s3] sm:$0xf] %vm979, %v851
    %981 = vst.msk [vmem:[%s3 + $0x4] sm:$0xf] %vm979, %v852
    %982 = vst.msk [vmem:[%s3 + $0x8] sm:$0xf] %vm979, %v853
    %983 = vst.msk [vmem:[%s3 + $0xc] sm:$0xf] %vm979, %v854
    %984 = vst.msk [vmem:[%s3 + $0x10] sm:$0xf] %vm979, %v855
    %985 = vst.msk [vmem:[%s3 + $0x14] sm:$0xf] %vm979, %v856
    %986 = vst.msk [vmem:[%s3 + $0x18] sm:$0xf] %vm979, %v857
    %987 = vst.msk [vmem:[%s3 + $0x1c] sm:$0xf] %vm979, %v858
    %988 = vst.msk [vmem:[%s3 + $0x20] sm:$0xf] %vm979, %v859
    %989 = vst.msk [vmem:[%s3 + $0x24] sm:$0xf] %vm979, %v860
    %990 = vst.msk [vmem:[%s3 + $0x28] sm:$0xf] %vm979, %v861
    %991 = vst.msk [vmem:[%s3 + $0x2c] sm:$0xf] %vm979, %v862
    %992 = vst.msk [vmem:[%s3 + $0x30] sm:$0xf] %vm979, %v863
    %993 = vst.msk [vmem:[%s3 + $0x34] sm:$0xf] %vm979, %v864
    %994 = vst.msk [vmem:[%s3 + $0x38] sm:$0xf] %vm979, %v865
    %995 = vst.msk [vmem:[%s3 + $0x3c] sm:$0xf] %vm979, %v866
    %996 = vst.msk [vmem:[%s3 + $0x40] sm:$0xf] %vm979, %v867
    %997 = vst.msk [vmem:[%s3 + $0x44] sm:$0xf] %vm979, %v868
    %998 = vst.msk [vmem:[%s3 + $0x48] sm:$0xf] %vm979, %v869
    %999 = vst.msk [vmem:[%s3 + $0x4c] sm:$0xf] %vm979, %v870
    %1000 = vst.msk [vmem:[%s3 + $0x50] sm:$0xf] %vm979, %v871
    %1001 = vst.msk [vmem:[%s3 + $0x54] sm:$0xf] %vm979, %v872
    %1002 = vst.msk [vmem:[%s3 + $0x58] sm:$0xf] %vm979, %v873
    %1003 = vst.msk [vmem:[%s3 + $0x5c] sm:$0xf] %vm979, %v874
    %1004 = vst.msk [vmem:[%s3 + $0x60] sm:$0xf] %vm979, %v875
    %1005 = vst.msk [vmem:[%s3 + $0x64] sm:$0xf] %vm979, %v876
    %1006 = vst.msk [vmem:[%s3 + $0x68] sm:$0xf] %vm979, %v877
    %1007 = vst.msk [vmem:[%s3 + $0x6c] sm:$0xf] %vm979, %v878
    %1008 = vst.msk [vmem:[%s3 + $0x70] sm:$0xf] %vm979, %v879
    %1009 = vst.msk [vmem:[%s3 + $0x74] sm:$0xf] %vm979, %v880
    %1010 = vst.msk [vmem:[%s3 + $0x78] sm:$0xf] %vm979, %v881
    %1011 = vst.msk [vmem:[%s3 + $0x7c] sm:$0xf] %vm979, %v882
    %1012 = vst.msk [vmem:[%s3 + $0x80] sm:$0xf] %vm979, %v883
    %1013 = vst.msk [vmem:[%s3 + $0x84] sm:$0xf] %vm979, %v884
    %1014 = vst.msk [vmem:[%s3 + $0x88] sm:$0xf] %vm979, %v885
    %1015 = vst.msk [vmem:[%s3 + $0x8c] sm:$0xf] %vm979, %v886
    %1016 = vst.msk [vmem:[%s3 + $0x90] sm:$0xf] %vm979, %v887
    %1017 = vst.msk [vmem:[%s3 + $0x94] sm:$0xf] %vm979, %v888
    %1018 = vst.msk [vmem:[%s3 + $0x98] sm:$0xf] %vm979, %v889
    %1019 = vst.msk [vmem:[%s3 + $0x9c] sm:$0xf] %vm979, %v890
    %1020 = vst.msk [vmem:[%s3 + $0xa0] sm:$0xf] %vm979, %v891
    %1021 = vst.msk [vmem:[%s3 + $0xa4] sm:$0xf] %vm979, %v892
    %1022 = vst.msk [vmem:[%s3 + $0xa8] sm:$0xf] %vm979, %v893
    %1023 = vst.msk [vmem:[%s3 + $0xac] sm:$0xf] %vm979, %v894
    %1024 = vst.msk [vmem:[%s3 + $0xb0] sm:$0xf] %vm979, %v895
    %1025 = vst.msk [vmem:[%s3 + $0xb4] sm:$0xf] %vm979, %v896
    %1026 = vst.msk [vmem:[%s3 + $0xb8] sm:$0xf] %vm979, %v897
    %1027 = vst.msk [vmem:[%s3 + $0xbc] sm:$0xf] %vm979, %v898
    %1028 = vst.msk [vmem:[%s3 + $0xc0] sm:$0xf] %vm979, %v899
    %1029 = vst.msk [vmem:[%s3 + $0xc4] sm:$0xf] %vm979, %v900
    %1030 = vst.msk [vmem:[%s3 + $0xc8] sm:$0xf] %vm979, %v901
    %1031 = vst.msk [vmem:[%s3 + $0xcc] sm:$0xf] %vm979, %v902
    %1032 = vst.msk [vmem:[%s3 + $0xd0] sm:$0xf] %vm979, %v903
    %1033 = vst.msk [vmem:[%s3 + $0xd4] sm:$0xf] %vm979, %v904
    %1034 = vst.msk [vmem:[%s3 + $0xd8] sm:$0xf] %vm979, %v905
    %1035 = vst.msk [vmem:[%s3 + $0xdc] sm:$0xf] %vm979, %v906
    %1036 = vst.msk [vmem:[%s3 + $0xe0] sm:$0xf] %vm979, %v907
    %1037 = vst.msk [vmem:[%s3 + $0xe4] sm:$0xf] %vm979, %v908
    %1038 = vst.msk [vmem:[%s3 + $0xe8] sm:$0xf] %vm979, %v909
    %1039 = vst.msk [vmem:[%s3 + $0xec] sm:$0xf] %vm979, %v910
    %1040 = vst.msk [vmem:[%s3 + $0xf0] sm:$0xf] %vm979, %v911
    %1041 = vst.msk [vmem:[%s3 + $0xf4] sm:$0xf] %vm979, %v912
    %1042 = vst.msk [vmem:[%s3 + $0xf8] sm:$0xf] %vm979, %v913
    %1043 = vst.msk [vmem:[%s3 + $0xfc] sm:$0xf] %vm979, %v914
    // Predicated region
    $region22: #{tpu_custom_call.1} parent=1 // pred_check
      _
    $region23: #{tpu_custom_call.1} parent=1 // pred_check_branch
      %1045 = sbr.rel (0) target = $region25
    $region24: #{tpu_custom_call.1} parent=1 // pred_region
      _
    $region25: #{tpu_custom_call.1} parent=1 // pred_fallthru
      _
    // Predicated region
    $region26: #{tpu_custom_call.1} parent=1 // pred_check
      _
    $region27: #{tpu_custom_call.1} parent=1 // pred_check_branch
      %1047 = sbr.rel (0) target = $region29
    $region28: #{tpu_custom_call.1} parent=1 // pred_region
      _
    $region29: #{tpu_custom_call.1} parent=1 // pred_fallthru
      _
    %1048 = vsyncpa [#allocation3], 1
    %1049 = vsyncpa [#allocation5], 1

</llo_original>
